<compile_context>
chip_gen: v7x
topology: tpu7x:2x2x1
jax: 0.10.0
libtpu: 0.0.40
codegen_flags: <defaults>
</compile_context>

<pallas_src>
import jax
import jax.numpy as jnp
from jax.experimental import pallas as pl
from jax.experimental.pallas import tpu as pltpu


_LANE = 512                       # lane width of the dense slabs (multiple of 128)
_ROW_TILE = 1024                  # max rows per grid step (multiple of 8) -> 2 MiB f32/array
_PALLAS_MIN_BYTES = 4 * 1024 * 1024   # ~16 bytes/row of HBM traffic; below this use fused XLA


def _exp_learning_kernel(neg_alpha_ref, x_ref, o_ref):
    # neg_alpha_ref: (1,) f32 in SMEM (whole array, resident for all steps).
    # x_ref: (3, row_tile, _LANE) f32 VMEM tile -> [trial, P_init, P_asym].
    # o_ref: (row_tile, _LANE) f32 VMEM tile.
    na = neg_alpha_ref[0]
    t = x_ref[0]
    pi = x_ref[1]
    pa = x_ref[2]
    # exp goes to the EUP slot; ~3 VPU ops/elem; kernel is HBM/DMA-bound.
    o_ref[...] = pa - (pa - pi) * jnp.exp(na * t)


def _round_up(n, m):
    return ((n + m - 1) // m) * m


def _canonicalize(x):
    x = jnp.asarray(x, dtype=jnp.float32)
    if x.ndim <= 1:
        x = x.reshape(1, x.shape[0])
    return x


def _reference(x, alpha):
    # Pure-JAX reference matching the PyTorch module.
    x = _canonicalize(x)
    t = x[:, 0:1]
    pi = x[:, 1:2]
    pa = x[:, 2:3]
    return pa - (pa - pi) * jnp.exp(-float(alpha) * t)


@jax.jit
def _xla_forward(x, neg_alpha):
    # Small/medium-batch fast path: a single fused XLA elementwise op.
    t = x[:, 0:1]
    pi = x[:, 1:2]
    pa = x[:, 2:3]
    return pa - (pa - pi) * jnp.exp(neg_alpha[0] * t)


@jax.jit
def _pallas_forward(x, neg_alpha):
    """Jitted: layout plumbing + pallas_call + un-pad all fuse under one jit."""
    B = x.shape[0]

    # ---- tile selection (static, trace-time) --------------------------------
    rows = -(-B // _LANE)                       # rows needed at lane width _LANE
    if rows <= 8:
        row_tile = 8
        rows_padded = 8                         # nothing to split below 8 sublanes
    elif rows <= 2 * _ROW_TILE:
        # Guarantee >= 2 grid steps so v7x's second TensorCore gets work.
        row_tile = _round_up(-(-rows // 2), 8)
        rows_padded = 2 * row_tile
    else:
        row_tile = _ROW_TILE
        rows_padded = _round_up(rows, _ROW_TILE)
    b_pad = rows_padded * _LANE

    # ---- one stacked, lane-dense slab: (3, rows_padded, _LANE) --------------
    xt = x[:, :3].T                                      # (3, B)
    xt = jnp.pad(xt, ((0, 0), (0, b_pad - B)))           # zero-pad (exp(0) is finite)
    slab = xt.reshape(3, rows_padded, _LANE)

    grid = (rows_padded // row_tile,)

    out_slab = pl.pallas_call(
        _exp_learning_kernel,
        out_shape=jax.ShapeDtypeStruct((rows_padded, _LANE), jnp.float32),
        grid=grid,
        in_specs=[
            pl.BlockSpec(memory_space=pltpu.MemorySpace.SMEM),          # neg_alpha (1,)
            pl.BlockSpec((3, row_tile, _LANE), lambda i: (0, i, 0)),    # stacked features
        ],
        out_specs=pl.BlockSpec((row_tile, _LANE), lambda i: (i, 0)),
        compiler_params=pltpu.CompilerParams(
            dimension_semantics=("parallel",),    # shard tiles across v7x's 2 TCs
            vmem_limit_bytes=32 * 1024 * 1024,    # 16 MiB double-buffered footprint + headroom
        ),
    )(neg_alpha, slab)

    return out_slab.reshape(b_pad)[:B].reshape(B, 1)


def exp_learning_forward(x, alpha, use_pallas=None):
    """Pallas equivalent of Exp_Learning_Model(alpha).forward(x).

    Accepts x of shape (B, >=3) or (>=3,) (promoted to (1, N) like torch .view).
    Returns array of shape (B, 1), float32.
    """
    x = _canonicalize(x)
    B = x.shape[0]
    neg_alpha = jnp.asarray([-float(alpha)], dtype=jnp.float32)

    if use_pallas is None:
        # ~16 bytes/row of HBM traffic in the ideal case; below a few MB the
        # launch / per-step overhead dominates -> stay on the fused XLA path.
        use_pallas = B * 16 >= _PALLAS_MIN_BYTES

    if not use_pallas:
        return _xla_forward(x, neg_alpha)
    return _pallas_forward(x, neg_alpha)


if __name__ == "__main__":
    key = jax.random.PRNGKey(0)
    alpha = 0.5

    def make_input(k, b):
        k_t, k_pi, k_pa = jax.random.split(k, 3)
        trial = jax.random.randint(k_t, (b, 1), 0, 10).astype(jnp.float32)
        p_init = jax.random.uniform(k_pi, (b, 1), minval=0.0, maxval=0.5)
        p_asym = jax.random.uniform(k_pa, (b, 1), minval=0.5, maxval=1.0)
        return jnp.concatenate([trial, p_init, p_asym], axis=1)

    k1, k2, k3 = jax.random.split(key, 3)

    # 1) Small batch (B=8), force the Pallas path to exercise the kernel.
    x_small = make_input(k1, 8)
    out_small = jax.block_until_ready(exp_learning_forward(x_small, alpha, use_pallas=True))
    assert out_small.shape == (8, 1)
    assert jnp.allclose(out_small, _reference(x_small, alpha), atol=1e-6, rtol=1e-6)

    # 2) Ragged batch not a multiple of the lane width (single-tile grid).
    x_mid = make_input(k2, 3000)
    out_mid = jax.block_until_ready(exp_learning_forward(x_mid, alpha, use_pallas=True))
    assert out_mid.shape == (3000, 1)
    assert jnp.allclose(out_mid, _reference(x_mid, alpha), atol=1e-6, rtol=1e-6)

    # 3) Larger batch: auto-selects Pallas, grid split into >=2 parallel steps.
    x_big = make_input(k3, 300_000)
    out_big = jax.block_until_ready(exp_learning_forward(x_big, alpha))
    assert out_big.shape == (300_000, 1)
    assert jnp.allclose(out_big, _reference(x_big, alpha), atol=1e-6, rtol=1e-6)

    # 4) Different alpha re-uses the same compiled kernel (alpha is a runtime
    #    SMEM operand, not a baked constant).
    out_big2 = jax.block_until_ready(exp_learning_forward(x_big, 1.25))
    assert jnp.allclose(out_big2, _reference(x_big, 1.25), atol=1e-6, rtol=1e-6)

    # 5) 1-D input promotion (torch .view(1, N) behavior), small-B XLA path.
    x_1d = jnp.array([3.0, 0.2, 0.9], dtype=jnp.float32)
    out_1d = jax.block_until_ready(exp_learning_forward(x_1d, alpha))
    assert out_1d.shape == (1, 1)
    assert jnp.allclose(out_1d, _reference(x_1d, alpha), atol=1e-6, rtol=1e-6)

    print("KERNEL_OK")
</pallas_src>

<mosaic_0001>
module attributes {stable_mosaic.version = 11 : i64} {
  func.func @_exp_learning_kernel(%arg0: i32, %arg1: memref<1xf32, #tpu.memory_space<smem>>, %arg2: memref<3x8x512xf32, #tpu.memory_space<vmem>>, %arg3: memref<8x512xf32, #tpu.memory_space<vmem>>) attributes {dimension_semantics = [#tpu.dimension_semantics<parallel>], iteration_bounds = array<i64: 1>, scalar_prefetch = 0 : i64, scratch_operands = 0 : i64, tpu.core_type = #tpu.core_type<tc>, window_params = [{transform_indices = @transform_0, window_bounds = array<i64: 1>}, {transform_indices = @transform_1, window_bounds = array<i64: 3, 8, 512>}, {transform_indices = @transform_2, window_bounds = array<i64: 8, 512>}]} {
    %c0 = arith.constant 0 : index
    %0 = memref.load %arg1[%c0] : memref<1xf32, #tpu.memory_space<smem>>
    %c0_0 = arith.constant 0 : index
    %c0_1 = arith.constant 0 : index
    %c0_2 = arith.constant 0 : index
    %1 = vector.load %arg2[%c0_0, %c0_1, %c0_2] : memref<3x8x512xf32, #tpu.memory_space<vmem>>, vector<1x8x512xf32>
    %2 = vector.shape_cast %1 : vector<1x8x512xf32> to vector<8x512xf32>
    %c1 = arith.constant 1 : index
    %c0_3 = arith.constant 0 : index
    %c0_4 = arith.constant 0 : index
    %3 = vector.load %arg2[%c1, %c0_3, %c0_4] : memref<3x8x512xf32, #tpu.memory_space<vmem>>, vector<1x8x512xf32>
    %4 = vector.shape_cast %3 : vector<1x8x512xf32> to vector<8x512xf32>
    %c2 = arith.constant 2 : index
    %c0_5 = arith.constant 0 : index
    %c0_6 = arith.constant 0 : index
    %5 = vector.load %arg2[%c2, %c0_5, %c0_6] : memref<3x8x512xf32, #tpu.memory_space<vmem>>, vector<1x8x512xf32>
    %6 = vector.shape_cast %5 : vector<1x8x512xf32> to vector<8x512xf32>
    %7 = arith.subf %6, %4 : vector<8x512xf32>
    %8 = vector.broadcast %0 : f32 to vector<8x512xf32>
    %9 = arith.mulf %8, %2 : vector<8x512xf32>
    %10 = math.exp %9 : vector<8x512xf32>
    %11 = arith.mulf %7, %10 : vector<8x512xf32>
    %12 = arith.subf %6, %11 : vector<8x512xf32>
    %c0_7 = arith.constant 0 : index
    %c0_8 = arith.constant 0 : index
    %13 = vector.load %arg3[%c0_7, %c0_8] : memref<8x512xf32, #tpu.memory_space<vmem>>, vector<8x512xf32>
    tpu.vector_store %arg3[%c0_7, %c0_8], %12 {strides = array<i32>} : memref<8x512xf32, #tpu.memory_space<vmem>>, vector<8x512xf32>,
    return
  }
  func.func @transform_0(%arg0: i32) -> i32 {
    %c0_i32 = arith.constant 0 : i32
    %c0_i32_0 = arith.constant 0 : i32
    return %c0_i32 : i32
  }
  func.func @transform_1(%arg0: i32) -> (i32, i32, i32) {
    %c0_i32 = arith.constant 0 : i32
    %c0_i32_0 = arith.constant 0 : i32
    %c0_i32_1 = arith.constant 0 : i32
    return %c0_i32, %arg0, %c0_i32_0 : i32, i32, i32
  }
  func.func @transform_2(%arg0: i32) -> (i32, i32) {
    %c0_i32 = arith.constant 0 : i32
    %c0_i32_0 = arith.constant 0 : i32
    return %arg0, %c0_i32 : i32, i32
  }
}

</mosaic_0001>

<llo_original>
// kernel: _pallas_forward.1
$region0: #{_pallas_forward.1}
  #allocation0 [shape = 'u32[]', space=smem, size = 0x4, offset = 0x4, fixed_abs, tag = 'smem constant byte address 0x4 - core index']
  #allocation1 [shape = 'u32[144,128]{1,0:T(1,128)}', space=vmem, size = 0x12000, scoped, tag = 'internal scratch']
  #allocation2 [shape = 'f32[1]{0:T(128)S(6)}', space=smem, size = 0x200, scoped, tag = 'scoped memory for _pallas_forward.1']
  %s0 = inlined_call_operand.<no memory space> [shape: f32[1], index: 0, kind: input, shape index: {}]
  %s1 = inlined_call_operand.vmem [shape: f32[3,8,512], index: 1, kind: input, shape index: {}]
  %s2 = inlined_call_operand.vmem [shape: f32[8,512], index: 2, kind: output, shape index: {}]
  %s3 = sld [smem:[#allocation0]]
  $region18: #{_pallas_forward.1} parent=0
    _
  %s5 = ssub.s32 1, %s3
  %s6 = scalar_select 0, %s5, %s3
  %7 = sst [smem:[#allocation2]] %s0
  // Predicated region
  $region2: #{_pallas_forward.1} parent=0 // pred_check
    _
  $region3: #{_pallas_forward.1} parent=0 // pred_check_branch
    %9 = sbr.rel (0) target = $region5
  $region4: #{_pallas_forward.1} parent=0 // pred_region
    _
  $region5: #{_pallas_forward.1} parent=0 // pred_fallthru
    _
  // Predicated region
  $region6: #{_pallas_forward.1} parent=0 // pred_check
    _
  $region7: #{_pallas_forward.1} parent=0 // pred_check_branch
    %11 = sbr.rel (0) target = $region9
  $region8: #{_pallas_forward.1} parent=0 // pred_region
    _
  $region9: #{_pallas_forward.1} parent=0 // pred_fallthru
    _
  %s12 = sld [smem:[#allocation2]]
  %v13 = vld [vmem:[%s1] sm:$0xff]
  %v14 = vld [vmem:[%s1 + $0x8] sm:$0xff]
  %v15 = vld [vmem:[%s1 + $0x10] sm:$0xff]
  %v16 = vld [vmem:[%s1 + $0x18] sm:$0xff]
  %s17 = scalar_lea.vmem %s1, 32
  %v18 = vld [vmem:[%s17] sm:$0xff]
  %v19 = vld [vmem:[%s17 + $0x8] sm:$0xff]
  %v20 = vld [vmem:[%s17 + $0x10] sm:$0xff]
  %v21 = vld [vmem:[%s17 + $0x18] sm:$0xff]
  %s22 = scalar_lea.vmem %s1, 64
  %v23 = vld [vmem:[%s22] sm:$0xff]
  %v24 = vld [vmem:[%s22 + $0x8] sm:$0xff]
  %v25 = vld [vmem:[%s22 + $0x10] sm:$0xff]
  %v26 = vld [vmem:[%s22 + $0x18] sm:$0xff]
  %v27 = vsub.f32 %v23, %v18
  %v28 = vsub.f32 %v24, %v19
  %v29 = vsub.f32 %v25, %v20
  %v30 = vsub.f32 %v26, %v21
  %v31 = vstv %s12
  %v32 = vmul.f32 %v31, %v13
  %v33 = vmul.f32 %v31, %v14
  %v34 = vmul.f32 %v31, %v15
  %v35 = vmul.f32 %v31, %v16
  %v36 = vmul.f32 %v32, 1.442695
  %v37 = vpow.pop %v36
  %v38 = vmul.f32 %v33, 1.442695
  %v39 = vpow.pop %v38
  %v40 = vmul.f32 %v34, 1.442695
  %v41 = vpow.pop %v40
  %v42 = vmul.f32 %v35, 1.442695
  %v43 = vpow.pop %v42
  %v44 = vmul.f32 %v27, %v37
  %v45 = vmul.f32 %v28, %v39
  %v46 = vmul.f32 %v29, %v41
  %v47 = vmul.f32 %v30, %v43
  %v48 = vsub.f32 %v23, %v44
  %v49 = vsub.f32 %v24, %v45
  %v50 = vsub.f32 %v25, %v46
  %v51 = vsub.f32 %v26, %v47
  %52 = vst [vmem:[%s2] sm:$0xff] %v48
  %53 = vst [vmem:[%s2 + $0x8] sm:$0xff] %v49
  %54 = vst [vmem:[%s2 + $0x10] sm:$0xff] %v50
  %55 = vst [vmem:[%s2 + $0x18] sm:$0xff] %v51
  // Predicated region
  $region10: #{_pallas_forward.1} parent=0 // pred_check
    _
  $region11: #{_pallas_forward.1} parent=0 // pred_check_branch
    %57 = sbr.rel (0) target = $region13
  $region12: #{_pallas_forward.1} parent=0 // pred_region
    _
  $region13: #{_pallas_forward.1} parent=0 // pred_fallthru
    _
  // Predicated region
  $region14: #{_pallas_forward.1} parent=0 // pred_check
    _
  $region15: #{_pallas_forward.1} parent=0 // pred_check_branch
    %59 = sbr.rel (0) target = $region17
  $region16: #{_pallas_forward.1} parent=0 // pred_region
    _
  $region17: #{_pallas_forward.1} parent=0 // pred_fallthru
    _

</llo_original>
